<compile_context>
chip_gen: v5e
topology: v5e:2x2
jax: 0.10.0
libtpu: 0.0.40
codegen_flags: <defaults>
</compile_context>

<pallas_src>
import jax
import jax.numpy as jnp
from jax.experimental import pallas as pl
from jax.experimental.pallas import tpu as pltpu

NUM_CONV_CH = 4
CONV_K = 3
FC1_DIM = 64


def _round_up(n, m):
    return ((n + m - 1) // m) * m


def net_kernel(x_ref,                         # (TB, F) input tile
               cw_ref, cb_ref,                # SMEM: (4,3) conv weight, (4,) conv bias
               w1e_ref,                       # (4*F, 64) expanded fc1 weight (odd rows 0)
               b1_ref, w2_ref, b2_ref,        # fc1 bias, fc2 weight/bias (unpadded)
               out_ref):                      # (TB, num_classes)
    x = x_ref[...]                            # (tb, F) f32
    tb, F = x.shape

    zero1 = jnp.zeros((tb, 1), jnp.float32)
    zero2 = jnp.zeros((tb, 2), jnp.float32)
    # Shifted copies of x; conv pad=1 boundary handled by the zero fill.
    xl = jnp.concatenate([zero1, x[:, :F - 1]], axis=1)     # x[i-1]
    xr = jnp.concatenate([x[:, 1:], zero1], axis=1)         # x[i+1]
    xr2 = jnp.concatenate([x[:, 2:], zero2], axis=1)        # x[i+2]

    h = jnp.zeros((tb, FC1_DIM), jnp.float32)
    for ch in range(NUM_CONV_CH):
        w0 = cw_ref[ch, 0]
        w1 = cw_ref[ch, 1]
        w2 = cw_ref[ch, 2]
        bias = cb_ref[ch]
        # Conv pre-activation (no bias) at position i and at position i+1.
        pre = w0 * xl + w1 * x + w2 * xr                    # conv[i]  - bias
        nxt = w0 * x + w1 * xr + w2 * xr2                   # conv[i+1]- bias
        # maxpool(2) + ReLU:  max(relu(a+b), relu(c+b)) == relu(max(a, c) + b).
        # Even columns of m are the pooled outputs; odd columns are unused and are
        # dropped by the zeroed odd rows of the expanded fc1 weight below.
        m = jnp.maximum(jnp.maximum(pre, nxt) + bias, 0.0)  # (tb, F)
        h = h + jnp.dot(m, w1e_ref[ch * F:(ch + 1) * F, :],
                        preferred_element_type=jnp.float32)

    h = jnp.maximum(h + b1_ref[...], 0.0)
    out_ref[...] = (jnp.dot(h, w2_ref[...], preferred_element_type=jnp.float32)
                    + b2_ref[...])


def net_forward(x, params, *, max_tile_b=1024):
    """x: (B, num_features) float32."""
    conv_w, conv_b, fc1_w, fc1_b, fc2_w, fc2_b = params
    x = x.astype(jnp.float32)
    B, F = x.shape
    assert F % 2 == 0 and F >= 4
    half = F // 2
    num_classes = fc2_w.shape[1]

    # --- expanded fc1 weight (tiny, built once in the wrapper) -----------------
    # torch .view(B,-1) is channel-major: flat[:, ch*half + j] = pooled[ch][:, j]
    # and pooled[ch][:, j] lives in column 2j of the kernel's per-channel `m`,
    # so row (ch, 2j) of the expanded weight holds fc1_w[ch*half + j]; odd rows = 0.
    w1e = jnp.zeros((NUM_CONV_CH, F, FC1_DIM), jnp.float32)
    w1e = w1e.at[:, 0::2, :].set(fc1_w.reshape(NUM_CONV_CH, half, FC1_DIM))
    w1e = w1e.reshape(NUM_CONV_CH * F, FC1_DIM)

    # --- batch tiling ------------------------------------------------------------
    if B < 8:
        tb = B                                    # block == full batch dim (legal)
    else:
        B8 = _round_up(B, 8)
        tb = min(max_tile_b, B8)
        if B8 >= 16:                              # >=2 grid steps -> both v7x TCs busy
            tb = min(tb, _round_up((B8 + 1) // 2, 8))
        rows_cap = max(8, ((2 << 20) // (4 * F)) // 8 * 8)   # keep x tile <= ~2 MiB
        tb = max(8, min(tb, rows_cap))
    n_tiles = pl.cdiv(B, tb)                      # ragged last tile handled by Pallas

    full2 = lambda shape: pl.BlockSpec(shape, lambda i: (0, 0))
    smem = pl.BlockSpec(memory_space=pltpu.MemorySpace.SMEM)

    flops = (2 * B * NUM_CONV_CH * F * FC1_DIM    # fc1 matmuls
             + 2 * B * FC1_DIM * num_classes      # fc2 matmul
             + 14 * B * NUM_CONV_CH * F)          # conv / relu / pool
    bytes_accessed = 4 * (B * F + B * num_classes
                          + NUM_CONV_CH * F * FC1_DIM
                          + FC1_DIM * num_classes + FC1_DIM + num_classes
                          + NUM_CONV_CH * (CONV_K + 1))

    out = pl.pallas_call(
        net_kernel,
        out_shape=jax.ShapeDtypeStruct((B, num_classes), jnp.float32),
        grid_spec=pltpu.PrefetchScalarGridSpec(
            num_scalar_prefetch=0,
            grid=(n_tiles,),
            in_specs=[
                pl.BlockSpec((tb, F), lambda i: (i, 0)),     # x
                smem, smem,                                  # conv_w (4,3), conv_b (4,)
                full2((NUM_CONV_CH * F, FC1_DIM)),           # expanded fc1_w
                full2((1, FC1_DIM)),                         # fc1_b
                full2((FC1_DIM, num_classes)),               # fc2_w (unpadded)
                full2((1, num_classes)),                     # fc2_b (unpadded)
            ],
            out_specs=pl.BlockSpec((tb, num_classes), lambda i: (i, 0)),
        ),
        compiler_params=pltpu.CompilerParams(
            dimension_semantics=("parallel",),
            vmem_limit_bytes=32 * 1024 * 1024),
        cost_estimate=pl.CostEstimate(flops=flops, transcendentals=0,
                                      bytes_accessed=bytes_accessed),
    )(x, conv_w, conv_b, w1e, fc1_b, fc2_w, fc2_b)

    return out


def ref_forward(x, params):
    """Pure-JAX reference matching torch semantics (eval mode)."""
    conv_w, conv_b, fc1_w, fc1_b, fc2_w, fc2_b = params
    B, F = x.shape
    xpad = jnp.pad(x, ((0, 0), (1, 1)))
    conv = jnp.stack(
        [sum(conv_w[c, k] * xpad[:, k:k + F] for k in range(CONV_K)) + conv_b[c]
         for c in range(NUM_CONV_CH)], axis=1)                   # (B, 4, F)
    conv = jnp.maximum(conv, 0.0)
    pooled = jnp.max(conv.reshape(B, NUM_CONV_CH, F // 2, 2), axis=-1)
    flat = pooled.reshape(B, -1)
    h = jnp.maximum(flat @ fc1_w + fc1_b, 0.0)
    return h @ fc2_w + fc2_b


def init_params(key, num_features, num_classes):
    # NOTE: fc weights are stored (in, out) = torch weight.T, and the Conv1d weight
    # has its in_channels=1 dim squeezed to (4, 3).  Porting a torch state_dict
    # requires that transpose/squeeze at this boundary.
    half = num_features // 2
    flat_dim = NUM_CONV_CH * half
    k = jax.random.split(key, 6)

    def u(kk, shape, fan_in):
        bound = 1.0 / jnp.sqrt(jnp.float32(fan_in))
        return jax.random.uniform(kk, shape, jnp.float32, -bound, bound)

    conv_w = u(k[0], (NUM_CONV_CH, CONV_K), CONV_K)     # (4, 3)
    conv_b = u(k[1], (NUM_CONV_CH,), CONV_K)            # (4,)
    fc1_w = u(k[2], (flat_dim, FC1_DIM), flat_dim)      # (in, out)
    fc1_b = u(k[3], (1, FC1_DIM), flat_dim)
    fc2_w = u(k[4], (FC1_DIM, num_classes), FC1_DIM)
    fc2_b = u(k[5], (1, num_classes), FC1_DIM)
    return conv_w, conv_b, fc1_w, fc1_b, fc2_w, fc2_b


if __name__ == "__main__":
    B = 2
    NUM_FEATURES = 16
    NUM_CLASSES = 10

    key = jax.random.PRNGKey(0)
    kx, kp = jax.random.split(key)
    x = jax.random.normal(kx, (B, NUM_FEATURES), jnp.float32)
    params = init_params(kp, NUM_FEATURES, NUM_CLASSES)

    out = net_forward(x, params)
    out = jax.block_until_ready(out)

    ref = ref_forward(x, params)
    assert out.shape == (B, NUM_CLASSES)
    assert jnp.allclose(out, ref, atol=1e-5, rtol=1e-5), (out, ref)

    print("KERNEL_OK")
</pallas_src>

<mosaic_0001>
module attributes {stable_mosaic.version = 11 : i64} {
  func.func @net_kernel(%arg0: i32, %arg1: memref<2x16xf32, #tpu.memory_space<vmem>>, %arg2: memref<4x3xf32, #tpu.memory_space<smem>>, %arg3: memref<4xf32, #tpu.memory_space<smem>>, %arg4: memref<64x64xf32, #tpu.memory_space<vmem>>, %arg5: memref<1x64xf32, #tpu.memory_space<vmem>>, %arg6: memref<64x10xf32, #tpu.memory_space<vmem>>, %arg7: memref<1x10xf32, #tpu.memory_space<vmem>>, %arg8: memref<2x10xf32, #tpu.memory_space<vmem>>) attributes {dimension_semantics = [#tpu.dimension_semantics<parallel>], iteration_bounds = array<i64: 1>, scalar_prefetch = 0 : i64, scratch_operands = 0 : i64, tpu.core_type = #tpu.core_type<tc>, window_params = [{transform_indices = @transform_0, window_bounds = array<i64: 2, 16>}, {transform_indices = @transform_1, window_bounds = array<i64: 4, 3>}, {transform_indices = @transform_2, window_bounds = array<i64: 4>}, {pipeline_mode = #tpu.pipeline_mode<synchronous>, transform_indices = @transform_3, window_bounds = array<i64: 64, 64>}, {pipeline_mode = #tpu.pipeline_mode<synchronous>, transform_indices = @transform_4, window_bounds = array<i64: 1, 64>}, {pipeline_mode = #tpu.pipeline_mode<synchronous>, transform_indices = @transform_5, window_bounds = array<i64: 64, 10>}, {pipeline_mode = #tpu.pipeline_mode<synchronous>, transform_indices = @transform_6, window_bounds = array<i64: 1, 10>}, {transform_indices = @transform_7, window_bounds = array<i64: 2, 10>}]} {
    %c0 = arith.constant 0 : index
    %c0_0 = arith.constant 0 : index
    %0 = vector.load %arg1[%c0, %c0_0] : memref<2x16xf32, #tpu.memory_space<vmem>>, vector<2x16xf32>
    %cst = arith.constant 0.000000e+00 : f32
    %1 = vector.broadcast %cst : f32 to vector<2x1xf32>
    %cst_1 = arith.constant 0.000000e+00 : f32
    %2 = vector.broadcast %cst_1 : f32 to vector<2x2xf32>
    %3 = vector.extract_strided_slice %0 {offsets = [0, 0], sizes = [2, 15], strides = [1, 1]} : vector<2x16xf32> to vector<2x15xf32>
    %4 = tpu.concatenate %1, %3 in 1 : vector<2x1xf32>, vector<2x15xf32> -> vector<2x16xf32>
    %5 = vector.extract_strided_slice %0 {offsets = [0, 1], sizes = [2, 15], strides = [1, 1]} : vector<2x16xf32> to vector<2x15xf32>
    %6 = tpu.concatenate %5, %1 in 1 : vector<2x15xf32>, vector<2x1xf32> -> vector<2x16xf32>
    %7 = vector.extract_strided_slice %0 {offsets = [0, 2], sizes = [2, 14], strides = [1, 1]} : vector<2x16xf32> to vector<2x14xf32>
    %8 = tpu.concatenate %7, %2 in 1 : vector<2x14xf32>, vector<2x2xf32> -> vector<2x16xf32>
    %cst_2 = arith.constant 0.000000e+00 : f32
    %9 = vector.broadcast %cst_2 : f32 to vector<2x64xf32>
    %c0_3 = arith.constant 0 : index
    %c0_4 = arith.constant 0 : index
    %10 = memref.load %arg2[%c0_3, %c0_4] : memref<4x3xf32, #tpu.memory_space<smem>>
    %c0_5 = arith.constant 0 : index
    %c1 = arith.constant 1 : index
    %11 = memref.load %arg2[%c0_5, %c1] : memref<4x3xf32, #tpu.memory_space<smem>>
    %c0_6 = arith.constant 0 : index
    %c2 = arith.constant 2 : index
    %12 = memref.load %arg2[%c0_6, %c2] : memref<4x3xf32, #tpu.memory_space<smem>>
    %c0_7 = arith.constant 0 : index
    %13 = memref.load %arg3[%c0_7] : memref<4xf32, #tpu.memory_space<smem>>
    %14 = vector.broadcast %10 : f32 to vector<2x16xf32>
    %15 = arith.mulf %14, %4 : vector<2x16xf32>
    %16 = vector.broadcast %11 : f32 to vector<2x16xf32>
    %17 = arith.mulf %16, %0 : vector<2x16xf32>
    %18 = arith.addf %15, %17 : vector<2x16xf32>
    %19 = vector.broadcast %12 : f32 to vector<2x16xf32>
    %20 = arith.mulf %19, %6 : vector<2x16xf32>
    %21 = arith.addf %18, %20 : vector<2x16xf32>
    %22 = vector.broadcast %10 : f32 to vector<2x16xf32>
    %23 = arith.mulf %22, %0 : vector<2x16xf32>
    %24 = vector.broadcast %11 : f32 to vector<2x16xf32>
    %25 = arith.mulf %24, %6 : vector<2x16xf32>
    %26 = arith.addf %23, %25 : vector<2x16xf32>
    %27 = vector.broadcast %12 : f32 to vector<2x16xf32>
    %28 = arith.mulf %27, %8 : vector<2x16xf32>
    %29 = arith.addf %26, %28 : vector<2x16xf32>
    %30 = arith.maximumf %21, %29 : vector<2x16xf32>
    %31 = vector.broadcast %13 : f32 to vector<2x16xf32>
    %32 = arith.addf %30, %31 : vector<2x16xf32>
    %cst_8 = arith.constant 0.000000e+00 : f32
    %33 = vector.broadcast %cst_8 : f32 to vector<2x16xf32>
    %34 = arith.maximumf %32, %33 : vector<2x16xf32>
    %c0_9 = arith.constant 0 : index
    %c0_10 = arith.constant 0 : index
    %35 = vector.load %arg4[%c0_9, %c0_10] : memref<64x64xf32, #tpu.memory_space<vmem>>, vector<16x64xf32>
    %cst_11 = arith.constant dense<0.000000e+00> : vector<2x64xf32>
    %36 = tpu.matmul %34, %35, %cst_11 {dimension_numbers = #tpu.dot_dimension_numbers<[1], [0], [0], [1], [0, 0, 1, 1], [], []>} : vector<2x16xf32>, vector<16x64xf32>, vector<2x64xf32> -> vector<2x64xf32>
    %37 = arith.addf %9, %36 : vector<2x64xf32>
    %c1_12 = arith.constant 1 : index
    %c0_13 = arith.constant 0 : index
    %38 = memref.load %arg2[%c1_12, %c0_13] : memref<4x3xf32, #tpu.memory_space<smem>>
    %c1_14 = arith.constant 1 : index
    %c1_15 = arith.constant 1 : index
    %39 = memref.load %arg2[%c1_14, %c1_15] : memref<4x3xf32, #tpu.memory_space<smem>>
    %c1_16 = arith.constant 1 : index
    %c2_17 = arith.constant 2 : index
    %40 = memref.load %arg2[%c1_16, %c2_17] : memref<4x3xf32, #tpu.memory_space<smem>>
    %c1_18 = arith.constant 1 : index
    %41 = memref.load %arg3[%c1_18] : memref<4xf32, #tpu.memory_space<smem>>
    %42 = vector.broadcast %38 : f32 to vector<2x16xf32>
    %43 = arith.mulf %42, %4 : vector<2x16xf32>
    %44 = vector.broadcast %39 : f32 to vector<2x16xf32>
    %45 = arith.mulf %44, %0 : vector<2x16xf32>
    %46 = arith.addf %43, %45 : vector<2x16xf32>
    %47 = vector.broadcast %40 : f32 to vector<2x16xf32>
    %48 = arith.mulf %47, %6 : vector<2x16xf32>
    %49 = arith.addf %46, %48 : vector<2x16xf32>
    %50 = vector.broadcast %38 : f32 to vector<2x16xf32>
    %51 = arith.mulf %50, %0 : vector<2x16xf32>
    %52 = vector.broadcast %39 : f32 to vector<2x16xf32>
    %53 = arith.mulf %52, %6 : vector<2x16xf32>
    %54 = arith.addf %51, %53 : vector<2x16xf32>
    %55 = vector.broadcast %40 : f32 to vector<2x16xf32>
    %56 = arith.mulf %55, %8 : vector<2x16xf32>
    %57 = arith.addf %54, %56 : vector<2x16xf32>
    %58 = arith.maximumf %49, %57 : vector<2x16xf32>
    %59 = vector.broadcast %41 : f32 to vector<2x16xf32>
    %60 = arith.addf %58, %59 : vector<2x16xf32>
    %cst_19 = arith.constant 0.000000e+00 : f32
    %61 = vector.broadcast %cst_19 : f32 to vector<2x16xf32>
    %62 = arith.maximumf %60, %61 : vector<2x16xf32>
    %c16 = arith.constant 16 : index
    %c0_20 = arith.constant 0 : index
    %63 = vector.load %arg4[%c16, %c0_20] : memref<64x64xf32, #tpu.memory_space<vmem>>, vector<16x64xf32>
    %cst_21 = arith.constant dense<0.000000e+00> : vector<2x64xf32>
    %64 = tpu.matmul %62, %63, %cst_21 {dimension_numbers = #tpu.dot_dimension_numbers<[1], [0], [0], [1], [0, 0, 1, 1], [], []>} : vector<2x16xf32>, vector<16x64xf32>, vector<2x64xf32> -> vector<2x64xf32>
    %65 = arith.addf %37, %64 : vector<2x64xf32>
    %c2_22 = arith.constant 2 : index
    %c0_23 = arith.constant 0 : index
    %66 = memref.load %arg2[%c2_22, %c0_23] : memref<4x3xf32, #tpu.memory_space<smem>>
    %c2_24 = arith.constant 2 : index
    %c1_25 = arith.constant 1 : index
    %67 = memref.load %arg2[%c2_24, %c1_25] : memref<4x3xf32, #tpu.memory_space<smem>>
    %c2_26 = arith.constant 2 : index
    %c2_27 = arith.constant 2 : index
    %68 = memref.load %arg2[%c2_26, %c2_27] : memref<4x3xf32, #tpu.memory_space<smem>>
    %c2_28 = arith.constant 2 : index
    %69 = memref.load %arg3[%c2_28] : memref<4xf32, #tpu.memory_space<smem>>
    %70 = vector.broadcast %66 : f32 to vector<2x16xf32>
    %71 = arith.mulf %70, %4 : vector<2x16xf32>
    %72 = vector.broadcast %67 : f32 to vector<2x16xf32>
    %73 = arith.mulf %72, %0 : vector<2x16xf32>
    %74 = arith.addf %71, %73 : vector<2x16xf32>
    %75 = vector.broadcast %68 : f32 to vector<2x16xf32>
    %76 = arith.mulf %75, %6 : vector<2x16xf32>
    %77 = arith.addf %74, %76 : vector<2x16xf32>
    %78 = vector.broadcast %66 : f32 to vector<2x16xf32>
    %79 = arith.mulf %78, %0 : vector<2x16xf32>
    %80 = vector.broadcast %67 : f32 to vector<2x16xf32>
    %81 = arith.mulf %80, %6 : vector<2x16xf32>
    %82 = arith.addf %79, %81 : vector<2x16xf32>
    %83 = vector.broadcast %68 : f32 to vector<2x16xf32>
    %84 = arith.mulf %83, %8 : vector<2x16xf32>
    %85 = arith.addf %82, %84 : vector<2x16xf32>
    %86 = arith.maximumf %77, %85 : vector<2x16xf32>
    %87 = vector.broadcast %69 : f32 to vector<2x16xf32>
    %88 = arith.addf %86, %87 : vector<2x16xf32>
    %cst_29 = arith.constant 0.000000e+00 : f32
    %89 = vector.broadcast %cst_29 : f32 to vector<2x16xf32>
    %90 = arith.maximumf %88, %89 : vector<2x16xf32>
    %c32 = arith.constant 32 : index
    %c0_30 = arith.constant 0 : index
    %91 = vector.load %arg4[%c32, %c0_30] : memref<64x64xf32, #tpu.memory_space<vmem>>, vector<16x64xf32>
    %cst_31 = arith.constant dense<0.000000e+00> : vector<2x64xf32>
    %92 = tpu.matmul %90, %91, %cst_31 {dimension_numbers = #tpu.dot_dimension_numbers<[1], [0], [0], [1], [0, 0, 1, 1], [], []>} : vector<2x16xf32>, vector<16x64xf32>, vector<2x64xf32> -> vector<2x64xf32>
    %93 = arith.addf %65, %92 : vector<2x64xf32>
    %c3 = arith.constant 3 : index
    %c0_32 = arith.constant 0 : index
    %94 = memref.load %arg2[%c3, %c0_32] : memref<4x3xf32, #tpu.memory_space<smem>>
    %c3_33 = arith.constant 3 : index
    %c1_34 = arith.constant 1 : index
    %95 = memref.load %arg2[%c3_33, %c1_34] : memref<4x3xf32, #tpu.memory_space<smem>>
    %c3_35 = arith.constant 3 : index
    %c2_36 = arith.constant 2 : index
    %96 = memref.load %arg2[%c3_35, %c2_36] : memref<4x3xf32, #tpu.memory_space<smem>>
    %c3_37 = arith.constant 3 : index
    %97 = memref.load %arg3[%c3_37] : memref<4xf32, #tpu.memory_space<smem>>
    %98 = vector.broadcast %94 : f32 to vector<2x16xf32>
    %99 = arith.mulf %98, %4 : vector<2x16xf32>
    %100 = vector.broadcast %95 : f32 to vector<2x16xf32>
    %101 = arith.mulf %100, %0 : vector<2x16xf32>
    %102 = arith.addf %99, %101 : vector<2x16xf32>
    %103 = vector.broadcast %96 : f32 to vector<2x16xf32>
    %104 = arith.mulf %103, %6 : vector<2x16xf32>
    %105 = arith.addf %102, %104 : vector<2x16xf32>
    %106 = vector.broadcast %94 : f32 to vector<2x16xf32>
    %107 = arith.mulf %106, %0 : vector<2x16xf32>
    %108 = vector.broadcast %95 : f32 to vector<2x16xf32>
    %109 = arith.mulf %108, %6 : vector<2x16xf32>
    %110 = arith.addf %107, %109 : vector<2x16xf32>
    %111 = vector.broadcast %96 : f32 to vector<2x16xf32>
    %112 = arith.mulf %111, %8 : vector<2x16xf32>
    %113 = arith.addf %110, %112 : vector<2x16xf32>
    %114 = arith.maximumf %105, %113 : vector<2x16xf32>
    %115 = vector.broadcast %97 : f32 to vector<2x16xf32>
    %116 = arith.addf %114, %115 : vector<2x16xf32>
    %cst_38 = arith.constant 0.000000e+00 : f32
    %117 = vector.broadcast %cst_38 : f32 to vector<2x16xf32>
    %118 = arith.maximumf %116, %117 : vector<2x16xf32>
    %c48 = arith.constant 48 : index
    %c0_39 = arith.constant 0 : index
    %119 = vector.load %arg4[%c48, %c0_39] : memref<64x64xf32, #tpu.memory_space<vmem>>, vector<16x64xf32>
    %cst_40 = arith.constant dense<0.000000e+00> : vector<2x64xf32>
    %120 = tpu.matmul %118, %119, %cst_40 {dimension_numbers = #tpu.dot_dimension_numbers<[1], [0], [0], [1], [0, 0, 1, 1], [], []>} : vector<2x16xf32>, vector<16x64xf32>, vector<2x64xf32> -> vector<2x64xf32>
    %121 = arith.addf %93, %120 : vector<2x64xf32>
    %c0_41 = arith.constant 0 : index
    %c0_42 = arith.constant 0 : index
    %122 = vector.load %arg5[%c0_41, %c0_42] : memref<1x64xf32, #tpu.memory_space<vmem>>, vector<1x64xf32>
    %123 = vector.broadcast %122 : vector<1x64xf32> to vector<2x64xf32>
    %124 = arith.addf %121, %123 : vector<2x64xf32>
    %cst_43 = arith.constant 0.000000e+00 : f32
    %125 = vector.broadcast %cst_43 : f32 to vector<2x64xf32>
    %126 = arith.maximumf %124, %125 : vector<2x64xf32>
    %c0_44 = arith.constant 0 : index
    %c0_45 = arith.constant 0 : index
    %127 = vector.load %arg6[%c0_44, %c0_45] : memref<64x10xf32, #tpu.memory_space<vmem>>, vector<64x10xf32>
    %cst_46 = arith.constant dense<0.000000e+00> : vector<2x10xf32>
    %128 = tpu.matmul %126, %127, %cst_46 {dimension_numbers = #tpu.dot_dimension_numbers<[1], [0], [0], [1], [0, 0, 1, 1], [], []>} : vector<2x64xf32>, vector<64x10xf32>, vector<2x10xf32> -> vector<2x10xf32>
    %c0_47 = arith.constant 0 : index
    %c0_48 = arith.constant 0 : index
    %129 = vector.load %arg7[%c0_47, %c0_48] : memref<1x10xf32, #tpu.memory_space<vmem>>, vector<1x10xf32>
    %130 = vector.broadcast %129 : vector<1x10xf32> to vector<2x10xf32>
    %131 = arith.addf %128, %130 : vector<2x10xf32>
    %c0_49 = arith.constant 0 : index
    %c0_50 = arith.constant 0 : index
    %132 = vector.load %arg8[%c0_49, %c0_50] : memref<2x10xf32, #tpu.memory_space<vmem>>, vector<2x10xf32>
    tpu.vector_store %arg8[%c0_49, %c0_50], %131 {strides = array<i32>} : memref<2x10xf32, #tpu.memory_space<vmem>>, vector<2x10xf32>,
    return
  }
  func.func @transform_0(%arg0: i32) -> (i32, i32) {
    %c0_i32 = arith.constant 0 : i32
    %c0_i32_0 = arith.constant 0 : i32
    return %arg0, %c0_i32 : i32, i32
  }
  func.func @transform_1(%arg0: i32) -> (i32, i32) {
    %c0_i32 = arith.constant 0 : i32
    %c0_i32_0 = arith.constant 0 : i32
    %c0_i32_1 = arith.constant 0 : i32
    return %c0_i32, %c0_i32_0 : i32, i32
  }
  func.func @transform_2(%arg0: i32) -> i32 {
    %c0_i32 = arith.constant 0 : i32
    %c0_i32_0 = arith.constant 0 : i32
    return %c0_i32 : i32
  }
  func.func @transform_3(%arg0: i32) -> (i32, i32) {
    %c0_i32 = arith.constant 0 : i32
    %c0_i32_0 = arith.constant 0 : i32
    %c0_i32_1 = arith.constant 0 : i32
    return %c0_i32, %c0_i32_0 : i32, i32
  }
  func.func @transform_4(%arg0: i32) -> (i32, i32) {
    %c0_i32 = arith.constant 0 : i32
    %c0_i32_0 = arith.constant 0 : i32
    %c0_i32_1 = arith.constant 0 : i32
    return %c0_i32, %c0_i32_0 : i32, i32
  }
  func.func @transform_5(%arg0: i32) -> (i32, i32) {
    %c0_i32 = arith.constant 0 : i32
    %c0_i32_0 = arith.constant 0 : i32
    %c0_i32_1 = arith.constant 0 : i32
    return %c0_i32, %c0_i32_0 : i32, i32
  }
  func.func @transform_6(%arg0: i32) -> (i32, i32) {
    %c0_i32 = arith.constant 0 : i32
    %c0_i32_0 = arith.constant 0 : i32
    %c0_i32_1 = arith.constant 0 : i32
    return %c0_i32, %c0_i32_0 : i32, i32
  }
  func.func @transform_7(%arg0: i32) -> (i32, i32) {
    %c0_i32 = arith.constant 0 : i32
    %c0_i32_0 = arith.constant 0 : i32
    return %arg0, %c0_i32 : i32, i32
  }
}

</mosaic_0001>

<llo_original>
// kernel: tpu_custom_call.1
$region0: #{tpu_custom_call.1}
  #allocation0 [shape = 'u32[]', space=smem, size = 0x4, offset = 0x4, fixed_abs, tag = 'smem constant byte address 0x4 - core index']
  #allocation1 [shape = 'u32[72,128]{1,0:T(1,128)}', space=vmem, size = 0x9000, scoped, tag = 'internal scratch']
  %s0 = inlined_call_operand.vmem [shape: f32[2,16], index: 0, kind: input, shape index: {}]
  %s1 = inlined_call_operand.vmem [shape: f32[4,3], index: 1, kind: input, shape index: {}]
  %s2 = inlined_call_operand.vmem [shape: f32[4], index: 2, kind: input, shape index: {}]
  %s3 = inlined_call_operand.vmem [shape: f32[64,64], index: 3, kind: input, shape index: {}]
  %s4 = inlined_call_operand.vmem [shape: f32[1,64], index: 4, kind: input, shape index: {}]
  %s5 = inlined_call_operand.vmem [shape: f32[64,10], index: 5, kind: input, shape index: {}]
  %s6 = inlined_call_operand.vmem [shape: f32[1,10], index: 6, kind: input, shape index: {}]
  %s7 = inlined_call_operand.hbm [shape: f32[2,10], index: 7, kind: output, shape index: {}]
  %s8 = sld [smem:[#allocation0]]
  $region46: #{tpu_custom_call.1} parent=0
    _
  %s10 = ssub.s32 1, %s8
  %s11 = scalar_select 0, %s10, %s8
  $region1: #{tpu_custom_call.1} parent=0
    #allocation2 [shape = 'u8[2048]{0}', space=smem, size = 0x800, scoped, tag = 'input window, operand 1, single buffered']
    #allocation3 [shape = 's32[1]{0}', space=sflag, size = 0x4, scoped, tag = 'scoped memory for tpu_custom_call.1']
    #allocation4 [shape = 's32[1]{0}', space=sflag, size = 0x4, scoped, tag = 'scoped memory for tpu_custom_call.1']
    #allocation5 [shape = 'u8[512]{0}', space=smem, size = 0x200, scoped, tag = 'input window, operand 2, single buffered']
    #allocation6 [shape = 's32[1]{0}', space=sflag, size = 0x4, scoped, tag = 'scoped memory for tpu_custom_call.1']
    #allocation7 [shape = 'u8[1024]{0}', space=vmem, size = 0x400, scoped, tag = 'output window, operand 0, single buffered']
    %12 = vsyncpa [#allocation4], 0
    %13 = vsyncpa [#allocation6], 0
    %14 = vsyncpa [#allocation3], 0
    // Predicated region
    $region2: #{tpu_custom_call.1} parent=1 // pred_check
      _
    $region3: #{tpu_custom_call.1} parent=1 // pred_check_branch
      %16 = sbr.rel (0) target = $region5
    $region4: #{tpu_custom_call.1} parent=1 // pred_region
      _
    $region5: #{tpu_custom_call.1} parent=1 // pred_fallthru
      _
    // Predicated region
    $region6: #{tpu_custom_call.1} parent=1 // pred_check
      _
    $region7: #{tpu_custom_call.1} parent=1 // pred_check_branch
      %18 = sbr.rel (0) target = $region9
    $region8: #{tpu_custom_call.1} parent=1 // pred_region
      %20 = vsyncadd [#allocation4], 0
      %s22 = sshll.u32 %s1, 4
      %s23 = int_to_ptr.vmem [resolvable:$true] %s22
      %25 = dma.vmem_to_smem %s23, 64, [#allocation2], [#allocation4]
    $region9: #{tpu_custom_call.1} parent=1 // pred_fallthru
      _
    // Predicated region
    $region10: #{tpu_custom_call.1} parent=1 // pred_check
      _
    $region11: #{tpu_custom_call.1} parent=1 // pred_check_branch
      %27 = sbr.rel (0) target = $region13
    $region12: #{tpu_custom_call.1} parent=1 // pred_region
      %29 = vsyncadd [#allocation6], 0
      %s31 = sshll.u32 %s2, 4
      %s32 = int_to_ptr.vmem [resolvable:$true] %s31
      %34 = dma.vmem_to_smem %s32, 16, [#allocation5], [#allocation6]
    $region13: #{tpu_custom_call.1} parent=1 // pred_fallthru
      _
    // Predicated region
    $region14: #{tpu_custom_call.1} parent=1 // pred_check
      _
    $region15: #{tpu_custom_call.1} parent=1 // pred_check_branch
      %36 = sbr.rel (0) target = $region17
    $region16: #{tpu_custom_call.1} parent=1 // pred_region
      _
    $region17: #{tpu_custom_call.1} parent=1 // pred_fallthru
      _
    // Predicated region
    $region18: #{tpu_custom_call.1} parent=1 // pred_check
      _
    $region19: #{tpu_custom_call.1} parent=1 // pred_check_branch
      %38 = sbr.rel (0) target = $region21
    $region20: #{tpu_custom_call.1} parent=1 // pred_region
      _
    $region21: #{tpu_custom_call.1} parent=1 // pred_fallthru
      _
    // Predicated region
    $region22: #{tpu_custom_call.1} parent=1 // pred_check
      _
    $region23: #{tpu_custom_call.1} parent=1 // pred_check_branch
      %40 = sbr.rel (0) target = $region25
    $region24: #{tpu_custom_call.1} parent=1 // pred_region
      _
    $region25: #{tpu_custom_call.1} parent=1 // pred_fallthru
      _
    // Predicated region
    $region26: #{tpu_custom_call.1} parent=1 // pred_check
      _
    $region27: #{tpu_custom_call.1} parent=1 // pred_check_branch
      %42 = sbr.rel (0) target = $region29
    $region28: #{tpu_custom_call.1} parent=1 // pred_region
      _
    $region29: #{tpu_custom_call.1} parent=1 // pred_fallthru
      _
    // Predicated region
    $region30: #{tpu_custom_call.1} parent=1 // pred_check
      _
    $region31: #{tpu_custom_call.1} parent=1 // pred_check_branch
      %44 = sbr.rel (0) target = $region33
    $region32: #{tpu_custom_call.1} parent=1 // pred_region
      %46 = dma.done [#allocation4], 64
    $region33: #{tpu_custom_call.1} parent=1 // pred_fallthru
      _
    // Predicated region
    $region34: #{tpu_custom_call.1} parent=1 // pred_check
      _
    $region35: #{tpu_custom_call.1} parent=1 // pred_check_branch
      %48 = sbr.rel (0) target = $region37
    $region36: #{tpu_custom_call.1} parent=1 // pred_region
      %50 = dma.done [#allocation6], 16
    $region37: #{tpu_custom_call.1} parent=1 // pred_fallthru
      _
    %51 = sfence
    %v52 = vld [vmem:[%s0] sm:$0x3]
    %54 = vrot.lane.b32.xlu0 %v52, 1
    %v55 = vpop.permute.xlu0 %54
    %vm57 = vcmask 7168
    %v58 = vsel %vm57, 0.0, %v55
    %59 = vrot.lane.b32.xlu0 %v52, 127
    %v60 = vpop.permute.xlu0 %59
    %vm62 = vcmask 121856
    %v63 = vsel %vm62, %v60, 0.0
    %64 = vrot.lane.b32.xlu0 %v52, 126
    %v65 = vpop.permute.xlu0 %64
    %vm67 = vcmask 113664
    %v68 = vsel %vm67, %v65, 0.0
    %s69 = sld [smem:[#allocation2]]
    %s70 = sld [smem:[#allocation2 + $0x1]]
    %s71 = sld [smem:[#allocation2 + $0x2]]
    %s72 = sld [smem:[#allocation5]]
    %v73 = vstv %s69
    %v74 = vmul.f32 %v73, %v58
    %v75 = vstv %s70
    %v76 = vmul.f32 %v75, %v52
    %v77 = vadd.f32 %v74, %v76
    %v78 = vstv %s71
    %v79 = vmul.f32 %v78, %v63
    %v80 = vadd.f32 %v77, %v79
    %v81 = vmul.f32 %v73, %v52
    %v82 = vmul.f32 %v75, %v63
    %v83 = vadd.f32 %v81, %v82
    %v84 = vmul.f32 %v78, %v68
    %v85 = vadd.f32 %v83, %v84
    %v86 = vmax.f32 %v80, %v85
    %v87 = vstv %s72
    %v88 = vadd.f32 %v86, %v87
    %v89 = vmax.f32 %v88, 0.0
    %v90 = vld [vmem:[%s3] sm:$0xff]
    %v91 = vld [vmem:[%s3 + $0x8] sm:$0xff]
    %s92 = sld [smem:[#allocation2 + $0x80]]
    %s93 = sld [smem:[#allocation2 + $0x81]]
    %s94 = sld [smem:[#allocation2 + $0x82]]
    %s95 = sld [smem:[#allocation5 + $0x1]]
    %v96 = vstv %s92
    %v97 = vmul.f32 %v96, %v58
    %v98 = vstv %s93
    %v99 = vmul.f32 %v98, %v52
    %v100 = vadd.f32 %v97, %v99
    %v101 = vstv %s94
    %v102 = vmul.f32 %v101, %v63
    %v103 = vadd.f32 %v100, %v102
    %v104 = vmul.f32 %v96, %v52
    %v105 = vmul.f32 %v98, %v63
    %v106 = vadd.f32 %v104, %v105
    %v107 = vmul.f32 %v101, %v68
    %v108 = vadd.f32 %v106, %v107
    %v109 = vmax.f32 %v103, %v108
    %v110 = vstv %s95
    %v111 = vadd.f32 %v109, %v110
    %v112 = vmax.f32 %v111, 0.0
    %v113 = vld [vmem:[%s3 + $0x10] sm:$0xff]
    %v114 = vld [vmem:[%s3 + $0x18] sm:$0xff]
    %vm115 = vcmask 130048
    %v117 = vsel %vm115, %v112, 0
    %119 = vmatpush.msra.mxu0 0.0
    %120 = vmatpush.msra.mxu0 0.0
    %121 = vmatpush.msra.mxu0 0.0
    %122 = vmatpush.msra.mxu0 0.0
    %123 = vmatpush.msra.mxu0 0.0
    %124 = vmatpush.msra.mxu0 0.0
    %125 = vmatpush.msra.mxu0 0.0
    %126 = vmatpush.msra.mxu0 0.0
    %127 = vmatpush.msra.mxu0 0.0
    %128 = vmatpush.msra.mxu0 0.0
    %129 = vmatpush.msra.mxu0 0.0
    %130 = vmatpush.msra.mxu0 0.0
    %131 = vmatpush.msra.mxu0 0.0
    %132 = vmatpush.msra.mxu0 0.0
    %133 = vmatpush.msra.mxu0 %v114
    %134 = vmatpush.msra.mxu0 %v113
    %135 = vmatmul.f32.gmra.mxu0 %v117
    %v136 = vpop.f32.mrf.mxu0
    %v137 = vadd.f32 0.0, %v136
    %138 = vdwg.mxu0
    %v140 = vsel %vm115, %v89, 0
    %142 = vmatpush.msra.mxu0 0.0
    %143 = vmatpush.msra.mxu0 0.0
    %144 = vmatpush.msra.mxu0 0.0
    %145 = vmatpush.msra.mxu0 0.0
    %146 = vmatpush.msra.mxu0 0.0
    %147 = vmatpush.msra.mxu0 0.0
    %148 = vmatpush.msra.mxu0 0.0
    %149 = vmatpush.msra.mxu0 0.0
    %150 = vmatpush.msra.mxu0 0.0
    %151 = vmatpush.msra.mxu0 0.0
    %152 = vmatpush.msra.mxu0 0.0
    %153 = vmatpush.msra.mxu0 0.0
    %154 = vmatpush.msra.mxu0 0.0
    %155 = vmatpush.msra.mxu0 0.0
    %156 = vmatpush.msra.mxu0 %v91
    %157 = vmatpush.msra.mxu0 %v90
    %158 = vmatmul.f32.gmra.mxu0 %v140
    %v159 = vpop.f32.mrf.mxu0
    %v160 = vadd.f32 %v137, %v159
    %161 = vdwg.mxu0
    %s162 = sld [smem:[#allocation2 + $0x100]]
    %s163 = sld [smem:[#allocation2 + $0x101]]
    %s164 = sld [smem:[#allocation2 + $0x102]]
    %s165 = sld [smem:[#allocation5 + $0x2]]
    %v166 = vstv %s162
    %v167 = vmul.f32 %v166, %v58
    %v168 = vstv %s163
    %v169 = vmul.f32 %v168, %v52
    %v170 = vadd.f32 %v167, %v169
    %v171 = vstv %s164
    %v172 = vmul.f32 %v171, %v63
    %v173 = vadd.f32 %v170, %v172
    %v174 = vmul.f32 %v166, %v52
    %v175 = vmul.f32 %v168, %v63
    %v176 = vadd.f32 %v174, %v175
    %v177 = vmul.f32 %v171, %v68
    %v178 = vadd.f32 %v176, %v177
    %v179 = vmax.f32 %v173, %v178
    %v180 = vstv %s165
    %v181 = vadd.f32 %v179, %v180
    %v182 = vmax.f32 %v181, 0.0
    %v183 = vld [vmem:[%s3 + $0x20] sm:$0xff]
    %v184 = vld [vmem:[%s3 + $0x28] sm:$0xff]
    %v186 = vsel %vm115, %v182, 0
    %188 = vmatpush.msra.mxu0 0.0
    %189 = vmatpush.msra.mxu0 0.0
    %190 = vmatpush.msra.mxu0 0.0
    %191 = vmatpush.msra.mxu0 0.0
    %192 = vmatpush.msra.mxu0 0.0
    %193 = vmatpush.msra.mxu0 0.0
    %194 = vmatpush.msra.mxu0 0.0
    %195 = vmatpush.msra.mxu0 0.0
    %196 = vmatpush.msra.mxu0 0.0
    %197 = vmatpush.msra.mxu0 0.0
    %198 = vmatpush.msra.mxu0 0.0
    %199 = vmatpush.msra.mxu0 0.0
    %200 = vmatpush.msra.mxu0 0.0
    %201 = vmatpush.msra.mxu0 0.0
    %202 = vmatpush.msra.mxu0 %v184
    %203 = vmatpush.msra.mxu0 %v183
    %204 = vmatmul.f32.gmra.mxu0 %v186
    %v205 = vpop.f32.mrf.mxu0
    %v206 = vadd.f32 0.0, %v205
    %207 = vdwg.mxu0
    %v208 = vadd.f32 %v160, %v206
    %s209 = sld [smem:[#allocation2 + $0x180]]
    %s210 = sld [smem:[#allocation2 + $0x181]]
    %s211 = sld [smem:[#allocation2 + $0x182]]
    %s212 = sld [smem:[#allocation5 + $0x3]]
    %v213 = vstv %s209
    %v214 = vmul.f32 %v213, %v58
    %v215 = vstv %s210
    %v216 = vmul.f32 %v215, %v52
    %v217 = vadd.f32 %v214, %v216
    %v218 = vstv %s211
    %v219 = vmul.f32 %v218, %v63
    %v220 = vadd.f32 %v217, %v219
    %v221 = vmul.f32 %v213, %v52
    %v222 = vmul.f32 %v215, %v63
    %v223 = vadd.f32 %v221, %v222
    %v224 = vmul.f32 %v218, %v68
    %v225 = vadd.f32 %v223, %v224
    %v226 = vmax.f32 %v220, %v225
    %v227 = vstv %s212
    %v228 = vadd.f32 %v226, %v227
    %v229 = vmax.f32 %v228, 0.0
    %v230 = vld [vmem:[%s3 + $0x30] sm:$0xff]
    %v231 = vld [vmem:[%s3 + $0x38] sm:$0xff]
    %v233 = vsel %vm115, %v229, 0
    %235 = vmatpush.msra.mxu0 0.0
    %236 = vmatpush.msra.mxu0 0.0
    %237 = vmatpush.msra.mxu0 0.0
    %238 = vmatpush.msra.mxu0 0.0
    %239 = vmatpush.msra.mxu0 0.0
    %240 = vmatpush.msra.mxu0 0.0
    %241 = vmatpush.msra.mxu0 0.0
    %242 = vmatpush.msra.mxu0 0.0
    %243 = vmatpush.msra.mxu0 0.0
    %244 = vmatpush.msra.mxu0 0.0
    %245 = vmatpush.msra.mxu0 0.0
    %246 = vmatpush.msra.mxu0 0.0
    %247 = vmatpush.msra.mxu0 0.0
    %248 = vmatpush.msra.mxu0 0.0
    %249 = vmatpush.msra.mxu0 %v231
    %250 = vmatpush.msra.mxu0 %v230
    %251 = vmatmul.f32.gmra.mxu0 %v233
    %v252 = vpop.f32.mrf.mxu0
    %v253 = vadd.f32 0.0, %v252
    %254 = vdwg.mxu0
    %v255 = vadd.f32 %v208, %v253
    %v256 = vld [vmem:[%s4] sm:$0x1]
    %v258 = vperm.slane %v256, 0
    %v260 = vadd.f32 %v255, %v258
    %v261 = vmax.f32 %v260, 0.0
    %v262 = vld [vmem:[%s5] sm:$0xff]
    %v263 = vld [vmem:[%s5 + $0x8] sm:$0xff]
    %v264 = vld [vmem:[%s5 + $0x10] sm:$0xff]
    %v265 = vld [vmem:[%s5 + $0x18] sm:$0xff]
    %v266 = vld [vmem:[%s5 + $0x20] sm:$0xff]
    %v267 = vld [vmem:[%s5 + $0x28] sm:$0xff]
    %v268 = vld [vmem:[%s5 + $0x30] sm:$0xff]
    %v269 = vld [vmem:[%s5 + $0x38] sm:$0xff]
    %v270 = vld [vmem:[%s6] sm:$0x1]
    %v272 = vperm.slane %v270, 0
    %vm274 = vcmask 523264
    %v276 = vsel %vm274, %v261, 0
    %278 = vmatpush.msra.mxu0 0.0
    %279 = vmatpush.msra.mxu0 0.0
    %280 = vmatpush.msra.mxu0 0.0
    %281 = vmatpush.msra.mxu0 0.0
    %282 = vmatpush.msra.mxu0 0.0
    %283 = vmatpush.msra.mxu0 0.0
    %284 = vmatpush.msra.mxu0 0.0
    %285 = vmatpush.msra.mxu0 0.0
    %286 = vmatpush.msra.mxu0 %v269
    %287 = vmatpush.msra.mxu0 %v268
    %288 = vmatpush.msra.mxu0 %v267
    %289 = vmatpush.msra.mxu0 %v266
    %290 = vmatpush.msra.mxu0 %v265
    %291 = vmatpush.msra.mxu0 %v264
    %292 = vmatpush.msra.mxu0 %v263
    %293 = vmatpush.msra.mxu0 %v262
    %294 = vmatmul.f32.gmra.mxu0 %v276
    %v295 = vpop.f32.mrf.mxu0
    %v296 = vadd.f32 %v272, %v295
    %297 = vdwg.mxu0
    %vm298 = vcmask 74752
    %299 = vst.msk [vmem:[#allocation7] sm:$0x3] %vm298, %v296
    // Predicated region
    $region38: #{tpu_custom_call.1} parent=1 // pred_check
      _
    $region39: #{tpu_custom_call.1} parent=1 // pred_check_branch
      %301 = sbr.rel (0) target = $region41
    $region40: #{tpu_custom_call.1} parent=1 // pred_region
      %303 = vsyncadd [#allocation3], 0
      %s305 = sshll.u32 [#allocation7], 4
      %s306 = int_to_ptr.vmem [resolvable:$true] %s305
      %s307 = sshll.u32 %s7, 4
      %s308 = int_to_ptr.hbm [resolvable:$true] %s307
      %310 = dma.vmem_to_hbm [thread:$0]  %s306, 32, %s308, [#allocation3]
    $region41: #{tpu_custom_call.1} parent=1 // pred_fallthru
      _
    // Predicated region
    $region42: #{tpu_custom_call.1} parent=1 // pred_check
      _
    $region43: #{tpu_custom_call.1} parent=1 // pred_check_branch
      %312 = sbr.rel (0) target = $region45
    $region44: #{tpu_custom_call.1} parent=1 // pred_region
      %314 = dma.done [#allocation3], 32
    $region45: #{tpu_custom_call.1} parent=1 // pred_fallthru
      _
    %315 = vsyncpa [#allocation3], 1
    %316 = vsyncpa [#allocation4], 1
    %317 = vsyncpa [#allocation6], 1

</llo_original>
